<compile_context>
chip_gen: v5e
topology: v5e:2x2
jax: 0.10.0
libtpu: 0.0.40
codegen_flags: <defaults>
</compile_context>

<pallas_src>
import jax
import jax.numpy as jnp
from jax.experimental import pallas as pl
from jax.experimental.pallas import tpu as pltpu


def _round_up(x, m):
    return ((x + m - 1) // m) * m


def _qnet_kernel(x_ref, w0_ref, b0_ref, w1_ref, b1_ref, wh_ref, bh_ref,
                 out_ref):
    # hidden layers: Linear -> ReLU (bf16 operands, f32 accumulate, f32 epilogue)
    x = x_ref[...].astype(jnp.bfloat16)            # in-kernel cast (hidden under DMA)
    h = jnp.dot(x, w0_ref[...], preferred_element_type=jnp.float32) + b0_ref[...]
    h = jnp.maximum(h, 0.0)
    h = jnp.dot(h.astype(jnp.bfloat16), w1_ref[...],
                preferred_element_type=jnp.float32) + b1_ref[...]
    h = jnp.maximum(h, 0.0)

    # fused (and, if dueling, algebraically pre-folded) Q head.  Columns
    # >= action_size are zero weights + zero bias -> exactly zero output.
    q = jnp.dot(h.astype(jnp.bfloat16), wh_ref[...],
                preferred_element_type=jnp.float32) + bh_ref[...]
    out_ref[...] = q.astype(out_ref.dtype)         # bf16 store (lane-dense, unmasked)


def prepare_params(params, *, dueling=False):
    """One-time (per parameter update) preprocessing.

    Folds the dueling head into a single lane-dense (h1, 128) weight and casts
    the matmul operands to bf16.  Call once and reuse across forward calls so
    no parameter-side XLA ops are dispatched per inference step.
    """
    h1, action_size = params["wa"].shape
    padded_head = max(128, _round_up(action_size, 128))

    wa = params["wa"].astype(jnp.float32)                    # (h1, A)
    ba = params["ba"].astype(jnp.float32).reshape(1, action_size)
    if dueling:
        # Q = V + (A - mean_j A)
        #   = h @ (wa + wv - mean_j(wa)) + (ba + bv - mean_j(ba))   (exact fold)
        wv = params["wv"].astype(jnp.float32)                # (h1, 1)
        bv = params["bv"].astype(jnp.float32).reshape(1, 1)
        wq = wa + wv - wa.mean(axis=1, keepdims=True)
        bq = ba + bv - ba.mean(axis=1, keepdims=True)
    else:
        wq, bq = wa, ba

    # zero-pad to 128 output lanes (lane-dense, unmasked stores); fold done in
    # f32 above, bf16 cast happens last to avoid extra rounding error.
    wh = jnp.zeros((h1, padded_head), jnp.float32).at[:, :action_size].set(wq)
    bh = jnp.zeros((1, padded_head), jnp.float32).at[:, :action_size].set(bq)

    return {
        "w0": params["w0"].astype(jnp.bfloat16),
        "b0": params["b0"].astype(jnp.float32).reshape(1, -1),
        "w1": params["w1"].astype(jnp.bfloat16),
        "b1": params["b1"].astype(jnp.float32).reshape(1, -1),
        "wh": wh.astype(jnp.bfloat16),
        "bh": bh,                       # biases stay f32 (VPU epilogue)
        "action_size": action_size,
    }


def qnetwork_forward(state, prep, *, block_batch=2048):
    """QNetwork forward pass in one batch-tiled Pallas kernel.

    `prep` is the output of prepare_params() (preprocessed once per update).
    """
    batch, state_size = state.shape
    w0, b0 = prep["w0"], prep["b0"]
    w1, b1 = prep["w1"], prep["b1"]
    wh, bh = prep["wh"], prep["bh"]
    action_size = prep["action_size"]
    h0, h1 = w0.shape[1], w1.shape[1]
    padded_head = wh.shape[1]

    # ---- batch tiling (multiples of 16 for bf16 sublane packing).
    # Tiny batches: a single tile (splitting only adds per-step overhead).
    # Larger batches: at least 2 grid steps so both v7x TensorCores get work,
    # capped at block_batch (working set stays far below VMEM limits).
    if batch <= 256:
        tb = _round_up(batch, 16)
    else:
        tb = min(_round_up(block_batch, 16), _round_up((batch + 1) // 2, 16))
    padded_batch = _round_up(batch, tb)

    x = state.astype(jnp.float32)       # no-op if already f32; cast to bf16 in kernel
    if padded_batch != batch:
        # TODO(synk): remainder-tile handling would avoid this pad copy for
        # very large non-divisible batches; negligible at these sizes.
        x = jnp.pad(x, ((0, padded_batch - batch), (0, 0)))

    const = lambda i: (0, 0)            # weights: same block every step -> VMEM-resident
    out = pl.pallas_call(
        _qnet_kernel,
        out_shape=jax.ShapeDtypeStruct((padded_batch, padded_head),
                                       jnp.bfloat16),
        grid=(padded_batch // tb,),
        in_specs=[
            pl.BlockSpec((tb, state_size), lambda i: (i, 0)),
            pl.BlockSpec((state_size, h0), const),
            pl.BlockSpec((1, h0), const),
            pl.BlockSpec((h0, h1), const),
            pl.BlockSpec((1, h1), const),
            pl.BlockSpec((h1, padded_head), const),
            pl.BlockSpec((1, padded_head), const),
        ],
        out_specs=pl.BlockSpec((tb, padded_head), lambda i: (i, 0)),
        compiler_params=pltpu.CompilerParams(
            dimension_semantics=("parallel",)),
    )(x, w0, b0, w1, b1, wh, bh)

    # padded lanes are exactly zero; slice off batch/head padding
    return out[:batch, :action_size]


def init_params(key, state_size, action_size, layer_units=(64, 64)):
    """Xavier-normal weights, zero biases (matches QNetwork.init_weights)."""
    def xavier_normal(k, fan_in, fan_out):
        std = jnp.sqrt(2.0 / (fan_in + fan_out))
        # stored as (in, out) == torch weight (out, in) transposed
        return std * jax.random.normal(k, (fan_in, fan_out), dtype=jnp.float32)

    k0, k1, ka, kv = jax.random.split(key, 4)
    h0, h1 = layer_units
    return {
        "w0": xavier_normal(k0, state_size, h0),
        "b0": jnp.zeros((1, h0), jnp.float32),
        "w1": xavier_normal(k1, h0, h1),
        "b1": jnp.zeros((1, h1), jnp.float32),
        "wa": xavier_normal(ka, h1, action_size),
        "ba": jnp.zeros((1, action_size), jnp.float32),
        "wv": xavier_normal(kv, h1, 1),
        "bv": jnp.zeros((1, 1), jnp.float32),
    }


def _reference(state, params, dueling):
    h = jnp.maximum(state @ params["w0"] + params["b0"], 0.0)
    h = jnp.maximum(h @ params["w1"] + params["b1"], 0.0)
    a = h @ params["wa"] + params["ba"]
    if not dueling:
        return a
    v = h @ params["wv"] + params["bv"]
    return v + (a - a.mean(axis=1, keepdims=True))


if __name__ == "__main__":
    key = jax.random.PRNGKey(0)
    kp, kx1, kx2 = jax.random.split(key, 3)

    state_size, action_size = 16, 8
    params = init_params(kp, state_size, action_size, layer_units=(64, 64))

    # one-time parameter preprocessing (per update), reused across calls
    prep_plain = prepare_params(params, dueling=False)
    prep_duel = prepare_params(params, dueling=True)

    # bf16 operands + bf16 output -> loosened tolerance vs. the f32 reference
    TOL = dict(atol=5e-2, rtol=5e-2)

    # small per-step batch (single grid tile, batch padded to 16)
    state = jax.random.normal(kx1, (8, state_size), dtype=jnp.float32)
    q_plain = jax.block_until_ready(qnetwork_forward(state, prep_plain))
    q_duel = jax.block_until_ready(qnetwork_forward(state, prep_duel))
    assert q_plain.shape == (8, action_size)
    assert q_duel.shape == (8, action_size)
    assert jnp.allclose(q_plain.astype(jnp.float32),
                        _reference(state, params, False), **TOL)
    assert jnp.allclose(q_duel.astype(jnp.float32),
                        _reference(state, params, True), **TOL)

    # larger batch with a small block_batch to exercise the multi-step
    # "parallel" grid (tb=128 -> 5 grid steps, last tile padded)
    state_big = jax.random.normal(kx2, (600, state_size), dtype=jnp.float32)
    q_big = jax.block_until_ready(
        qnetwork_forward(state_big, prep_duel, block_batch=128))
    assert q_big.shape == (600, action_size)
    assert jnp.allclose(q_big.astype(jnp.float32),
                        _reference(state_big, params, True), **TOL)

    print("KERNEL_OK")
</pallas_src>

<mosaic_0001>
module attributes {stable_mosaic.version = 11 : i64} {
  func.func @_qnet_kernel(%arg0: i32, %arg1: memref<16x16xf32, #tpu.memory_space<vmem>>, %arg2: memref<16x64xbf16, #tpu.memory_space<vmem>>, %arg3: memref<1x64xf32, #tpu.memory_space<vmem>>, %arg4: memref<64x64xbf16, #tpu.memory_space<vmem>>, %arg5: memref<1x64xf32, #tpu.memory_space<vmem>>, %arg6: memref<64x128xbf16, #tpu.memory_space<vmem>>, %arg7: memref<1x128xf32, #tpu.memory_space<vmem>>, %arg8: memref<16x128xbf16, #tpu.memory_space<vmem>>) attributes {dimension_semantics = [#tpu.dimension_semantics<parallel>], iteration_bounds = array<i64: 1>, scalar_prefetch = 0 : i64, scratch_operands = 0 : i64, tpu.core_type = #tpu.core_type<tc>, window_params = [{transform_indices = @transform_0, window_bounds = array<i64: 16, 16>}, {pipeline_mode = #tpu.pipeline_mode<synchronous>, transform_indices = @transform_1, window_bounds = array<i64: 16, 64>}, {pipeline_mode = #tpu.pipeline_mode<synchronous>, transform_indices = @transform_2, window_bounds = array<i64: 1, 64>}, {pipeline_mode = #tpu.pipeline_mode<synchronous>, transform_indices = @transform_3, window_bounds = array<i64: 64, 64>}, {pipeline_mode = #tpu.pipeline_mode<synchronous>, transform_indices = @transform_4, window_bounds = array<i64: 1, 64>}, {pipeline_mode = #tpu.pipeline_mode<synchronous>, transform_indices = @transform_5, window_bounds = array<i64: 64, 128>}, {pipeline_mode = #tpu.pipeline_mode<synchronous>, transform_indices = @transform_6, window_bounds = array<i64: 1, 128>}, {transform_indices = @transform_7, window_bounds = array<i64: 16, 128>}]} {
    %c0 = arith.constant 0 : index
    %c0_0 = arith.constant 0 : index
    %0 = vector.load %arg1[%c0, %c0_0] : memref<16x16xf32, #tpu.memory_space<vmem>>, vector<16x16xf32>
    %1 = arith.truncf %0 : vector<16x16xf32> to vector<16x16xbf16>
    %c0_1 = arith.constant 0 : index
    %c0_2 = arith.constant 0 : index
    %2 = vector.load %arg2[%c0_1, %c0_2] : memref<16x64xbf16, #tpu.memory_space<vmem>>, vector<16x64xbf16>
    %cst = arith.constant dense<0.000000e+00> : vector<16x64xf32>
    %3 = tpu.matmul %1, %2, %cst {dimension_numbers = #tpu.dot_dimension_numbers<[1], [0], [0], [1], [0, 0, 1, 1], [], []>} : vector<16x16xbf16>, vector<16x64xbf16>, vector<16x64xf32> -> vector<16x64xf32>
    %c0_3 = arith.constant 0 : index
    %c0_4 = arith.constant 0 : index
    %4 = vector.load %arg3[%c0_3, %c0_4] : memref<1x64xf32, #tpu.memory_space<vmem>>, vector<1x64xf32>
    %5 = vector.broadcast %4 : vector<1x64xf32> to vector<16x64xf32>
    %6 = arith.addf %3, %5 : vector<16x64xf32>
    %cst_5 = arith.constant 0.000000e+00 : f32
    %7 = vector.broadcast %cst_5 : f32 to vector<16x64xf32>
    %8 = arith.maximumf %6, %7 : vector<16x64xf32>
    %9 = arith.truncf %8 : vector<16x64xf32> to vector<16x64xbf16>
    %c0_6 = arith.constant 0 : index
    %c0_7 = arith.constant 0 : index
    %10 = vector.load %arg4[%c0_6, %c0_7] : memref<64x64xbf16, #tpu.memory_space<vmem>>, vector<64x64xbf16>
    %cst_8 = arith.constant dense<0.000000e+00> : vector<16x64xf32>
    %11 = tpu.matmul %9, %10, %cst_8 {dimension_numbers = #tpu.dot_dimension_numbers<[1], [0], [0], [1], [0, 0, 1, 1], [], []>} : vector<16x64xbf16>, vector<64x64xbf16>, vector<16x64xf32> -> vector<16x64xf32>
    %c0_9 = arith.constant 0 : index
    %c0_10 = arith.constant 0 : index
    %12 = vector.load %arg5[%c0_9, %c0_10] : memref<1x64xf32, #tpu.memory_space<vmem>>, vector<1x64xf32>
    %13 = vector.broadcast %12 : vector<1x64xf32> to vector<16x64xf32>
    %14 = arith.addf %11, %13 : vector<16x64xf32>
    %cst_11 = arith.constant 0.000000e+00 : f32
    %15 = vector.broadcast %cst_11 : f32 to vector<16x64xf32>
    %16 = arith.maximumf %14, %15 : vector<16x64xf32>
    %17 = arith.truncf %16 : vector<16x64xf32> to vector<16x64xbf16>
    %c0_12 = arith.constant 0 : index
    %c0_13 = arith.constant 0 : index
    %18 = vector.load %arg6[%c0_12, %c0_13] : memref<64x128xbf16, #tpu.memory_space<vmem>>, vector<64x128xbf16>
    %cst_14 = arith.constant dense<0.000000e+00> : vector<16x128xf32>
    %19 = tpu.matmul %17, %18, %cst_14 {dimension_numbers = #tpu.dot_dimension_numbers<[1], [0], [0], [1], [0, 0, 1, 1], [], []>} : vector<16x64xbf16>, vector<64x128xbf16>, vector<16x128xf32> -> vector<16x128xf32>
    %c0_15 = arith.constant 0 : index
    %c0_16 = arith.constant 0 : index
    %20 = vector.load %arg7[%c0_15, %c0_16] : memref<1x128xf32, #tpu.memory_space<vmem>>, vector<1x128xf32>
    %21 = vector.broadcast %20 : vector<1x128xf32> to vector<16x128xf32>
    %22 = arith.addf %19, %21 : vector<16x128xf32>
    %23 = arith.truncf %22 : vector<16x128xf32> to vector<16x128xbf16>
    %c0_17 = arith.constant 0 : index
    %c0_18 = arith.constant 0 : index
    %24 = vector.load %arg8[%c0_17, %c0_18] : memref<16x128xbf16, #tpu.memory_space<vmem>>, vector<16x128xbf16>
    tpu.vector_store %arg8[%c0_17, %c0_18], %23 {strides = array<i32>} : memref<16x128xbf16, #tpu.memory_space<vmem>>, vector<16x128xbf16>,
    return
  }
  func.func @transform_0(%arg0: i32) -> (i32, i32) {
    %c0_i32 = arith.constant 0 : i32
    %c0_i32_0 = arith.constant 0 : i32
    return %arg0, %c0_i32 : i32, i32
  }
  func.func @transform_1(%arg0: i32) -> (i32, i32) {
    %c0_i32 = arith.constant 0 : i32
    %c0_i32_0 = arith.constant 0 : i32
    %c0_i32_1 = arith.constant 0 : i32
    return %c0_i32, %c0_i32_0 : i32, i32
  }
  func.func @transform_2(%arg0: i32) -> (i32, i32) {
    %c0_i32 = arith.constant 0 : i32
    %c0_i32_0 = arith.constant 0 : i32
    %c0_i32_1 = arith.constant 0 : i32
    return %c0_i32, %c0_i32_0 : i32, i32
  }
  func.func @transform_3(%arg0: i32) -> (i32, i32) {
    %c0_i32 = arith.constant 0 : i32
    %c0_i32_0 = arith.constant 0 : i32
    %c0_i32_1 = arith.constant 0 : i32
    return %c0_i32, %c0_i32_0 : i32, i32
  }
  func.func @transform_4(%arg0: i32) -> (i32, i32) {
    %c0_i32 = arith.constant 0 : i32
    %c0_i32_0 = arith.constant 0 : i32
    %c0_i32_1 = arith.constant 0 : i32
    return %c0_i32, %c0_i32_0 : i32, i32
  }
  func.func @transform_5(%arg0: i32) -> (i32, i32) {
    %c0_i32 = arith.constant 0 : i32
    %c0_i32_0 = arith.constant 0 : i32
    %c0_i32_1 = arith.constant 0 : i32
    return %c0_i32, %c0_i32_0 : i32, i32
  }
  func.func @transform_6(%arg0: i32) -> (i32, i32) {
    %c0_i32 = arith.constant 0 : i32
    %c0_i32_0 = arith.constant 0 : i32
    %c0_i32_1 = arith.constant 0 : i32
    return %c0_i32, %c0_i32_0 : i32, i32
  }
  func.func @transform_7(%arg0: i32) -> (i32, i32) {
    %c0_i32 = arith.constant 0 : i32
    %c0_i32_0 = arith.constant 0 : i32
    return %arg0, %c0_i32 : i32, i32
  }
}

</mosaic_0001>

<llo_original>
// kernel: tpu_custom_call.1
$region0: #{tpu_custom_call.1}
  #allocation0 [shape = 'u32[]', space=smem, size = 0x4, offset = 0x4, fixed_abs, tag = 'smem constant byte address 0x4 - core index']
  #allocation1 [shape = 'u32[72,128]{1,0:T(1,128)}', space=vmem, size = 0x9000, scoped, tag = 'internal scratch']
  %s0 = inlined_call_operand.hbm [shape: f32[16,16], index: 0, kind: input, shape index: {}]
  %s1 = inlined_call_operand.hbm [shape: bf16[16,64], index: 1, kind: input, shape index: {}]
  %s2 = inlined_call_operand.vmem [shape: f32[1,64], index: 2, kind: input, shape index: {}]
  %s3 = inlined_call_operand.hbm [shape: bf16[64,64], index: 3, kind: input, shape index: {}]
  %s4 = inlined_call_operand.vmem [shape: f32[1,64], index: 4, kind: input, shape index: {}]
  %s5 = inlined_call_operand.hbm [shape: bf16[64,128], index: 5, kind: input, shape index: {}]
  %s6 = inlined_call_operand.vmem [shape: f32[1,128], index: 6, kind: input, shape index: {}]
  %s7 = inlined_call_operand.hbm [shape: bf16[16,128], index: 7, kind: output, shape index: {}]
  %s8 = sld [smem:[#allocation0]]
  $region54: #{tpu_custom_call.1} parent=0
    _
  %s10 = ssub.s32 1, %s8
  %s11 = scalar_select 0, %s10, %s8
  $region1: #{tpu_custom_call.1} parent=0
    #allocation2 [shape = 'u8[8192]{0}', space=vmem, size = 0x2000, scoped, tag = 'input window, operand 0, single buffered']
    #allocation3 [shape = 's32[1]{0}', space=sflag, size = 0x4, scoped, tag = 'scoped memory for tpu_custom_call.1']
    #allocation4 [shape = 's32[1]{0}', space=sflag, size = 0x4, scoped, tag = 'scoped memory for tpu_custom_call.1']
    #allocation5 [shape = 'u8[4096]{0}', space=vmem, size = 0x1000, scoped, tag = 'input window, operand 1, single buffered']
    #allocation6 [shape = 's32[1]{0}', space=sflag, size = 0x4, scoped, tag = 'scoped memory for tpu_custom_call.1']
    #allocation7 [shape = 'u8[16384]{0}', space=vmem, size = 0x4000, scoped, tag = 'input window, operand 3, single buffered']
    #allocation8 [shape = 'u8[16384]{0}', space=vmem, size = 0x4000, scoped, tag = 'input window, operand 5, single buffered']
    #allocation9 [shape = 's32[1]{0}', space=sflag, size = 0x4, scoped, tag = 'scoped memory for tpu_custom_call.1']
    #allocation10 [shape = 'u8[4096]{0}', space=vmem, size = 0x1000, scoped, tag = 'output window, operand 0, single buffered']
    %12 = vsyncpa [#allocation3], 0
    %13 = vsyncpa [#allocation6], 0
    %14 = vsyncpa [#allocation9], 0
    %15 = vsyncpa [#allocation4], 0
    // Predicated region
    $region2: #{tpu_custom_call.1} parent=1 // pred_check
      _
    $region3: #{tpu_custom_call.1} parent=1 // pred_check_branch
      %17 = sbr.rel (0) target = $region5
    $region4: #{tpu_custom_call.1} parent=1 // pred_region
      %19 = vsyncadd [#allocation3], 0
      %s20 = sshll.u32 %s0, 4
      %s21 = int_to_ptr.hbm [resolvable:$true] %s20
      %s22 = sshll.u32 [#allocation2], 4
      %s23 = int_to_ptr.vmem [resolvable:$true] %s22
      %28 = dma.hbm_to_vmem [thread:$0]  %s21, 256, %s23, [#allocation3], 128, 128, 8
    $region5: #{tpu_custom_call.1} parent=1 // pred_fallthru
      _
    // Predicated region
    $region6: #{tpu_custom_call.1} parent=1 // pred_check
      _
    $region7: #{tpu_custom_call.1} parent=1 // pred_check_branch
      %30 = sbr.rel (0) target = $region9
    $region8: #{tpu_custom_call.1} parent=1 // pred_region
      %32 = vsyncadd [#allocation6], 0
      %s33 = sshll.u32 %s1, 4
      %s34 = int_to_ptr.hbm [resolvable:$true] %s33
      %s35 = sshll.u32 [#allocation5], 4
      %s36 = int_to_ptr.vmem [resolvable:$true] %s35
      %41 = dma.hbm_to_vmem [thread:$0]  %s34, 128, %s36, [#allocation6], 64, 64, 4
    $region9: #{tpu_custom_call.1} parent=1 // pred_fallthru
      _
    // Predicated region
    $region10: #{tpu_custom_call.1} parent=1 // pred_check
      _
    $region11: #{tpu_custom_call.1} parent=1 // pred_check_branch
      %43 = sbr.rel (0) target = $region13
    $region12: #{tpu_custom_call.1} parent=1 // pred_region
      _
    $region13: #{tpu_custom_call.1} parent=1 // pred_fallthru
      _
    // Predicated region
    $region14: #{tpu_custom_call.1} parent=1 // pred_check
      _
    $region15: #{tpu_custom_call.1} parent=1 // pred_check_branch
      %45 = sbr.rel (0) target = $region17
    $region16: #{tpu_custom_call.1} parent=1 // pred_region
      %47 = vsyncadd [#allocation6], 0
      %s48 = sshll.u32 %s3, 4
      %s49 = int_to_ptr.hbm [resolvable:$true] %s48
      %s50 = sshll.u32 [#allocation7], 4
      %s51 = int_to_ptr.vmem [resolvable:$true] %s50
      %56 = dma.hbm_to_vmem [thread:$0]  %s49, 512, %s51, [#allocation6], 64, 64, 4
    $region17: #{tpu_custom_call.1} parent=1 // pred_fallthru
      _
    // Predicated region
    $region18: #{tpu_custom_call.1} parent=1 // pred_check
      _
    $region19: #{tpu_custom_call.1} parent=1 // pred_check_branch
      %58 = sbr.rel (0) target = $region21
    $region20: #{tpu_custom_call.1} parent=1 // pred_region
      _
    $region21: #{tpu_custom_call.1} parent=1 // pred_fallthru
      _
    // Predicated region
    $region22: #{tpu_custom_call.1} parent=1 // pred_check
      _
    $region23: #{tpu_custom_call.1} parent=1 // pred_check_branch
      %60 = sbr.rel (0) target = $region25
    $region24: #{tpu_custom_call.1} parent=1 // pred_region
      %62 = vsyncadd [#allocation9], 0
      %s63 = sshll.u32 %s5, 4
      %s64 = int_to_ptr.hbm [resolvable:$true] %s63
      %s65 = sshll.u32 [#allocation8], 4
      %s66 = int_to_ptr.vmem [resolvable:$true] %s65
      %71 = dma.hbm_to_vmem [thread:$0]  %s64, 512, %s66, [#allocation9], 64, 64, 4
    $region25: #{tpu_custom_call.1} parent=1 // pred_fallthru
      _
    // Predicated region
    $region26: #{tpu_custom_call.1} parent=1 // pred_check
      _
    $region27: #{tpu_custom_call.1} parent=1 // pred_check_branch
      %73 = sbr.rel (0) target = $region29
    $region28: #{tpu_custom_call.1} parent=1 // pred_region
      _
    $region29: #{tpu_custom_call.1} parent=1 // pred_fallthru
      _
    // Predicated region
    $region30: #{tpu_custom_call.1} parent=1 // pred_check
      _
    $region31: #{tpu_custom_call.1} parent=1 // pred_check_branch
      %75 = sbr.rel (0) target = $region33
    $region32: #{tpu_custom_call.1} parent=1 // pred_region
      %77 = dma.done [#allocation3], 256
    $region33: #{tpu_custom_call.1} parent=1 // pred_fallthru
      _
    // Predicated region
    $region34: #{tpu_custom_call.1} parent=1 // pred_check
      _
    $region35: #{tpu_custom_call.1} parent=1 // pred_check_branch
      %79 = sbr.rel (0) target = $region37
    $region36: #{tpu_custom_call.1} parent=1 // pred_region
      %81 = dma.done [#allocation6], 128
    $region37: #{tpu_custom_call.1} parent=1 // pred_fallthru
      _
    // Predicated region
    $region38: #{tpu_custom_call.1} parent=1 // pred_check
      _
    $region39: #{tpu_custom_call.1} parent=1 // pred_check_branch
      %83 = sbr.rel (0) target = $region41
    $region40: #{tpu_custom_call.1} parent=1 // pred_region
      %85 = dma.done [#allocation6], 512
    $region41: #{tpu_custom_call.1} parent=1 // pred_fallthru
      _
    // Predicated region
    $region42: #{tpu_custom_call.1} parent=1 // pred_check
      _
    $region43: #{tpu_custom_call.1} parent=1 // pred_check_branch
      %87 = sbr.rel (0) target = $region45
    $region44: #{tpu_custom_call.1} parent=1 // pred_region
      %89 = dma.done [#allocation9], 512
    $region45: #{tpu_custom_call.1} parent=1 // pred_fallthru
      _
    %v91 = vld [vmem:[#allocation2] sm:$0xff]
    %v92 = vld [vmem:[#allocation2 + $0x8] sm:$0xff]
    %v93 = vpack.c.bf16 %v92, %v91
    %v94 = vld [vmem:[#allocation5] sm:$0xf]
    %v95 = vld [vmem:[#allocation5 + $0x4] sm:$0xf]
    %v96 = vld [vmem:[%s2] sm:$0x1]
    %v98 = vperm.slane %v96, 0
    %v102 = vunpack.c.l.b16 %v94
    %v103 = vunpack.c.l.b16 %v95
    %v104 = vpack.c.b16 %v103, %v102
    %vm106 = vcmask 130048
    %v108 = vsel %vm106, %v93, 0
    %110 = vmatpush.bf16.msra.mxu0 0
    %111 = vmatpush.bf16.msra.mxu0 0
    %112 = vmatpush.bf16.msra.mxu0 0
    %113 = vmatpush.bf16.msra.mxu0 0
    %114 = vmatpush.bf16.msra.mxu0 0
    %115 = vmatpush.bf16.msra.mxu0 0
    %116 = vmatpush.bf16.msra.mxu0 0
    %117 = vmatpush.bf16.msra.mxu0 %v104
    %118 = vmatmul.bf16.gmra.mxu0 %v108
    %v119 = vpop.f32.mrf.mxu0
    %v120 = vadd.f32 %v98, %v119
    %v121 = vpop.f32.mrf.mxu0
    %v122 = vadd.f32 %v98, %v121
    %123 = vdwg.mxu0
    %v124 = vmax.f32 %v120, 0.0
    %v125 = vmax.f32 %v122, 0.0
    %v126 = vpack.c.bf16 %v125, %v124
    %v127 = vld [vmem:[#allocation7] sm:$0xf]
    %v128 = vld [vmem:[#allocation7 + $0x4] sm:$0xf]
    %v129 = vld [vmem:[#allocation7 + $0x8] sm:$0xf]
    %v130 = vld [vmem:[#allocation7 + $0xc] sm:$0xf]
    %v131 = vld [vmem:[#allocation7 + $0x10] sm:$0xf]
    %v132 = vld [vmem:[#allocation7 + $0x14] sm:$0xf]
    %v133 = vld [vmem:[#allocation7 + $0x18] sm:$0xf]
    %v134 = vld [vmem:[#allocation7 + $0x1c] sm:$0xf]
    %v135 = vld [vmem:[%s4] sm:$0x1]
    %v137 = vperm.slane %v135, 0
    %v147 = vunpack.c.l.b16 %v127
    %v148 = vunpack.c.l.b16 %v128
    %v149 = vunpack.c.l.b16 %v129
    %v150 = vunpack.c.l.b16 %v130
    %v151 = vunpack.c.l.b16 %v131
    %v152 = vunpack.c.l.b16 %v132
    %v153 = vunpack.c.l.b16 %v133
    %v154 = vunpack.c.l.b16 %v134
    %v155 = vpack.c.b16 %v148, %v147
    %v156 = vpack.c.b16 %v150, %v149
    %v157 = vpack.c.b16 %v152, %v151
    %v158 = vpack.c.b16 %v154, %v153
    %vm163 = vcmask 523264
    %v165 = vsel %vm163, %v126, 0
    %167 = vmatpush.bf16.msra.mxu0 0
    %168 = vmatpush.bf16.msra.mxu0 0
    %169 = vmatpush.bf16.msra.mxu0 0
    %170 = vmatpush.bf16.msra.mxu0 0
    %171 = vmatpush.bf16.msra.mxu0 %v158
    %172 = vmatpush.bf16.msra.mxu0 %v157
    %173 = vmatpush.bf16.msra.mxu0 %v156
    %174 = vmatpush.bf16.msra.mxu0 %v155
    %175 = vmatmul.bf16.gmra.mxu0 %v165
    %v176 = vpop.f32.mrf.mxu0
    %v177 = vadd.f32 %v137, %v176
    %v178 = vpop.f32.mrf.mxu0
    %v179 = vadd.f32 %v137, %v178
    %180 = vdwg.mxu0
    %v181 = vmax.f32 %v177, 0.0
    %v182 = vmax.f32 %v179, 0.0
    %v183 = vpack.c.bf16 %v182, %v181
    %v184 = vld [vmem:[#allocation8] sm:$0xf]
    %v185 = vld [vmem:[#allocation8 + $0x4] sm:$0xf]
    %v186 = vld [vmem:[#allocation8 + $0x8] sm:$0xf]
    %v187 = vld [vmem:[#allocation8 + $0xc] sm:$0xf]
    %v188 = vld [vmem:[#allocation8 + $0x10] sm:$0xf]
    %v189 = vld [vmem:[#allocation8 + $0x14] sm:$0xf]
    %v190 = vld [vmem:[#allocation8 + $0x18] sm:$0xf]
    %v191 = vld [vmem:[#allocation8 + $0x1c] sm:$0xf]
    %v192 = vld [vmem:[%s6] sm:$0x1]
    %v194 = vperm.slane %v192, 0
    %v204 = vunpack.c.l.b16 %v184
    %v205 = vunpack.c.l.b16 %v185
    %v206 = vunpack.c.l.b16 %v186
    %v207 = vunpack.c.l.b16 %v187
    %v208 = vunpack.c.l.b16 %v188
    %v209 = vunpack.c.l.b16 %v189
    %v210 = vunpack.c.l.b16 %v190
    %v211 = vunpack.c.l.b16 %v191
    %v212 = vpack.c.b16 %v205, %v204
    %v213 = vpack.c.b16 %v207, %v206
    %v214 = vpack.c.b16 %v209, %v208
    %v215 = vpack.c.b16 %v211, %v210
    %v221 = vsel %vm163, %v183, 0
    %223 = vmatpush.bf16.msra.mxu0 0
    %224 = vmatpush.bf16.msra.mxu0 0
    %225 = vmatpush.bf16.msra.mxu0 0
    %226 = vmatpush.bf16.msra.mxu0 0
    %227 = vmatpush.bf16.msra.mxu0 %v215
    %228 = vmatpush.bf16.msra.mxu0 %v214
    %229 = vmatpush.bf16.msra.mxu0 %v213
    %230 = vmatpush.bf16.msra.mxu0 %v212
    %231 = vmatmul.bf16.gmra.mxu0 %v221
    %v232 = vpop.f32.mrf.mxu0
    %v233 = vadd.f32 %v194, %v232
    %v234 = vpop.f32.mrf.mxu0
    %v235 = vadd.f32 %v194, %v234
    %236 = vdwg.mxu0
    %v237 = vpack.c.bf16 %v233, %v233
    %v238 = vpack.c.bf16 %v235, %v235
    %239 = vst [vmem:[#allocation10] sm:$0xf] %v237
    %240 = vst [vmem:[#allocation10 + $0x4] sm:$0xf] %v238
    // Predicated region
    $region46: #{tpu_custom_call.1} parent=1 // pred_check
      _
    $region47: #{tpu_custom_call.1} parent=1 // pred_check_branch
      %242 = sbr.rel (0) target = $region49
    $region48: #{tpu_custom_call.1} parent=1 // pred_region
      %244 = vsyncadd [#allocation4], 0
      %s245 = sshll.u32 [#allocation10], 4
      %s246 = int_to_ptr.vmem [resolvable:$true] %s245
      %s247 = sshll.u32 %s7, 4
      %s248 = int_to_ptr.hbm [resolvable:$true] %s247
      %253 = dma.vmem_to_hbm [thread:$0]  %s246, 128, %s248, [#allocation4], 64, 64, 4
    $region49: #{tpu_custom_call.1} parent=1 // pred_fallthru
      _
    // Predicated region
    $region50: #{tpu_custom_call.1} parent=1 // pred_check
      _
    $region51: #{tpu_custom_call.1} parent=1 // pred_check_branch
      %255 = sbr.rel (0) target = $region53
    $region52: #{tpu_custom_call.1} parent=1 // pred_region
      %257 = dma.done [#allocation4], 128
    $region53: #{tpu_custom_call.1} parent=1 // pred_fallthru
      _
    %258 = vsyncpa [#allocation3], 1
    %259 = vsyncpa [#allocation6], 1
    %260 = vsyncpa [#allocation9], 1
    %261 = vsyncpa [#allocation4], 1

</llo_original>
